<compile_context>
chip_gen: v7x
topology: tpu7x:2x2x1
jax: 0.10.0
libtpu: 0.0.40
codegen_flags: <defaults>
</compile_context>

<pallas_src>
import functools

import jax
import jax.numpy as jnp
from jax.experimental import pallas as pl
from jax.experimental.pallas import tpu as pltpu


_VMEM_LIMIT_BYTES = 48 * 1024 * 1024      # < v7x 64 MiB physical, > all default scoped limits
_DECODE_VMEM_BUDGET = 20 * 1024 * 1024    # target per-step working set for the decode kernel


def _pick_tile(dim, candidates):
    """Largest candidate that divides `dim`, else the full dim (full-dim blocks
    are always legal w.r.t. the (8,128) rule)."""
    for c in candidates:
        if c <= dim and dim % c == 0:
            return c
    return dim


def _cparams(dims):
    return pltpu.CompilerParams(dimension_semantics=dims,
                                vmem_limit_bytes=_VMEM_LIMIT_BYTES)


# ----------------------------------------------------------------------------
# Kernel 1: encoder matmul, member-major output, K-tiled.
#   x (R, K) bf16   [R = B*S src rows + B pooled-src rows]
#   w (M, K, D) bf16
#   -> out (M, R, D) f32, accumulated over K tiles directly in the resident
#      f32 output block (k innermost, "arbitrary").
# ----------------------------------------------------------------------------
def _encode_kernel(x_ref, w_ref, o_ref):
    @pl.when(pl.program_id(2) == 0)
    def _():
        o_ref[...] = jnp.zeros_like(o_ref)

    o_ref[0] += jnp.dot(x_ref[...], w_ref[0], preferred_element_type=jnp.float32)


def _choose_encode_tiles(R, K, D):
    tile_k = _pick_tile(K, (1024, 512, 256, 128))
    # keep the double-buffered f32 (tile_r, D) output block <= ~8 MiB
    max_r = max(8, (8 * 1024 * 1024) // (8 * D))
    cands = tuple(c for c in (1024, 512, 256, 128, 64, 32, 16, 8) if c <= max_r)
    tile_r = _pick_tile(R, cands) if cands else R
    return tile_r, tile_k


def ensemble_encode(x_bf16, w_enc_bf16):
    """x: (R, K) bf16, w_enc: (M, K, D) bf16 -> (M, R, D) f32 (member-major)."""
    R, K = x_bf16.shape
    M, _, D = w_enc_bf16.shape
    tile_r, tile_k = _choose_encode_tiles(R, K, D)
    return pl.pallas_call(
        _encode_kernel,
        out_shape=jax.ShapeDtypeStruct((M, R, D), jnp.float32),
        grid_spec=pltpu.PrefetchScalarGridSpec(
            num_scalar_prefetch=0,
            grid=(M, R // tile_r, K // tile_k),
            in_specs=[
                pl.BlockSpec((tile_r, tile_k), lambda m, r, k: (r, k)),
                pl.BlockSpec((1, tile_k, D), lambda m, r, k: (m, k, 0)),
            ],
            out_specs=pl.BlockSpec((1, tile_r, D), lambda m, r, k: (m, r, 0)),
        ),
        compiler_params=_cparams(("parallel", "parallel", "arbitrary")),
    )(x_bf16, w_enc_bf16)


# ----------------------------------------------------------------------------
# Kernel 2 (fallback): ctx_m = masked mean-pool(enc_m) over S, S-tiled reduction.
# Only used when decode() receives encoder outputs not produced by this
# Ensemble's encode() (the normal path gets ctx for free from Kernel 1).
# ----------------------------------------------------------------------------
def _ctx_pool_kernel(mask_ref, enc_ref, ctx_ref, msum_ref):
    s = pl.program_id(1)

    @pl.when(s == 0)
    def _():
        ctx_ref[...] = jnp.zeros_like(ctx_ref)
        msum_ref[...] = jnp.zeros_like(msum_ref)

    mask = mask_ref[...]                                            # (B, tile_s)
    msum_ref[...] += jnp.sum(mask, axis=1, keepdims=True)
    ctx_ref[0] += jnp.sum(enc_ref[0] * mask[:, :, None], axis=1)

    @pl.when(s == pl.num_programs(1) - 1)
    def _():
        # NOTE: all-zero mask rows give ctx = 0 here; the f32 reference gives NaN.
        ctx_ref[0] = ctx_ref[0] / jnp.maximum(msum_ref[...], 1.0)


def ensemble_ctx_pool(enc, mask):
    """enc: (M,B,S,D) f32, mask: (B,S) f32 -> ctx (M,B,D) f32."""
    M, B, S, D = enc.shape
    tile_s = _pick_tile(S, (1024, 512, 256, 128))
    return pl.pallas_call(
        _ctx_pool_kernel,
        out_shape=jax.ShapeDtypeStruct((M, B, D), jnp.float32),
        grid_spec=pltpu.PrefetchScalarGridSpec(
            num_scalar_prefetch=0,
            grid=(M, S // tile_s),
            in_specs=[
                pl.BlockSpec((B, tile_s), lambda m, s: (0, s)),
                pl.BlockSpec((1, B, tile_s, D), lambda m, s: (m, 0, s, 0)),
            ],
            out_specs=pl.BlockSpec((1, B, D), lambda m, s: (m, 0, 0)),
            scratch_shapes=[pltpu.VMEM((B, 1), jnp.float32)],
        ),
        compiler_params=_cparams(("parallel", "arbitrary")),
    )(mask, enc)


# ----------------------------------------------------------------------------
# Kernel 3 (decode, fused H+A): V-tiled ensemble logit accumulation.
#   hidden_m = tgt_aug @ Wd_aug_m      (computed at v==0, cached in VMEM)
#   logit_sum[bt, v] = sum_m (hidden_m @ Wo_m)[bt, v]   (resident across m)
#   lse_sum[bt]      = sum_m logsumexp_V(hidden_m @ Wo_m)[bt]   (online over v)
# Grid = (BT tiles "parallel", V tiles "arbitrary", M "arbitrary").
# Wd_aug is re-DMA'd each step (m innermost) but overlaps compute; the dominant
# stream is W_out, whose arithmetic intensity ~ tile_bt flops/byte.
# ----------------------------------------------------------------------------
def _decode_logit_lse_kernel(tgt_ref, wd_ref, wo_ref, logit_ref, lse_ref,
                             h_ref, mmax_ref, ssum_ref):
    v = pl.program_id(1)
    m = pl.program_id(2)

    @pl.when(v == 0)
    def _():
        # fused stage H: [tgt | onehot_b] @ [Wd_m ; ctx_m] == tgt @ Wd_m + ctx_m[b]
        h = jnp.dot(tgt_ref[...], wd_ref[0], preferred_element_type=jnp.float32)
        h_ref[m] = h.astype(h_ref.dtype)
        mmax_ref[m] = jnp.full(mmax_ref.shape[1:], -jnp.inf, dtype=jnp.float32)
        ssum_ref[m] = jnp.zeros(ssum_ref.shape[1:], dtype=jnp.float32)

    @pl.when((v == 0) & (m == 0))
    def _():
        lse_ref[...] = jnp.zeros_like(lse_ref)

    @pl.when(m == 0)          # fresh output tile for each (bt, v) block
    def _():
        logit_ref[...] = jnp.zeros_like(logit_ref)

    # (tile_bt, D) bf16 @ (D, tile_v) bf16 -> f32 on the MXU
    logit = jnp.dot(h_ref[m], wo_ref[0], preferred_element_type=jnp.float32)
    logit_ref[...] += logit

    # online logsumexp over V tiles for model m (column-vector state: matches
    # the layout of lane-axis reductions, no relayout per step)
    m_prev = mmax_ref[m]                                            # (tile_bt, 1)
    m_new = jnp.maximum(m_prev, jnp.max(logit, axis=-1, keepdims=True))
    ssum_ref[m] = ssum_ref[m] * jnp.exp(m_prev - m_new) + jnp.sum(
        jnp.exp(logit - m_new), axis=-1, keepdims=True)
    mmax_ref[m] = m_new

    @pl.when(v == pl.num_programs(1) - 1)
    def _():
        lse_ref[...] += mmax_ref[m] + jnp.log(ssum_ref[m])


def _decode_vmem_bytes(tile_bt, tile_v, D, Daug, M):
    return (2 * tile_bt * Daug * 2        # tgt_aug block (bf16, double-buffered)
            + 2 * Daug * D * 2            # Wd_aug block
            + 2 * D * tile_v * 2          # W_out block
            + 2 * tile_bt * tile_v * 4    # logit_sum output block (f32)
            + 2 * tile_bt * 4             # lse_sum output block
            + M * tile_bt * D * 2         # hidden cache scratch (bf16)
            + 2 * M * tile_bt * 4)        # online-LSE state


def _choose_decode_tiles(BT, V, D, Daug, M):
    tile_bt = _pick_tile(BT, (1024, 512, 256, 128, 64, 32, 16))
    tile_v = _pick_tile(V, (2048, 1024, 512, 256, 128))
    # shrink (power-of-two steps only) until within the v7x-safe VMEM budget
    while _decode_vmem_bytes(tile_bt, tile_v, D, Daug, M) > _DECODE_VMEM_BUDGET:
        if tile_v > 512 and V % (tile_v // 2) == 0:
            tile_v //= 2
        elif tile_bt > 128 and BT % (tile_bt // 2) == 0:
            tile_bt //= 2
        else:
            break
    return tile_bt, tile_v


def ensemble_logit_lse(tgt_aug, wd_aug, w_out_bf16, tile_bt, tile_v):
    """tgt_aug: (BT, D+B) bf16, wd_aug: (M, D+B, D) bf16, w_out: (M, D, V) bf16
    -> (logit_sum (BT, V) f32, lse_sum (BT, 1) f32)."""
    BT, Daug = tgt_aug.shape
    M, _, D = wd_aug.shape
    V = w_out_bf16.shape[-1]
    assert BT % tile_bt == 0 and V % tile_v == 0
    return pl.pallas_call(
        _decode_logit_lse_kernel,
        out_shape=(jax.ShapeDtypeStruct((BT, V), jnp.float32),
                   jax.ShapeDtypeStruct((BT, 1), jnp.float32)),
        grid_spec=pltpu.PrefetchScalarGridSpec(
            num_scalar_prefetch=0,
            grid=(BT // tile_bt, V // tile_v, M),
            in_specs=[
                pl.BlockSpec((tile_bt, Daug), lambda bt, v, m: (bt, 0)),
                pl.BlockSpec((1, Daug, D), lambda bt, v, m: (m, 0, 0)),
                pl.BlockSpec((1, D, tile_v), lambda bt, v, m: (m, 0, v)),
            ],
            out_specs=(
                pl.BlockSpec((tile_bt, tile_v), lambda bt, v, m: (bt, v)),
                pl.BlockSpec((tile_bt, 1), lambda bt, v, m: (bt, 0)),
            ),
            scratch_shapes=[
                pltpu.VMEM((M, tile_bt, D), jnp.bfloat16),   # per-model hidden cache
                pltpu.VMEM((M, tile_bt, 1), jnp.float32),    # online-LSE running max
                pltpu.VMEM((M, tile_bt, 1), jnp.float32),    # online-LSE running sum
            ],
        ),
        compiler_params=_cparams(("parallel", "arbitrary", "arbitrary")),
    )(tgt_aug, wd_aug, w_out_bf16)


# ----------------------------------------------------------------------------
# Kernel 4 (decode finalize): out = (logit_sum - lse_sum) * (1/M),
# large lane-dense tiles, output aliased onto logit_sum.
# ----------------------------------------------------------------------------
def _finalize_kernel(logit_ref, lse_ref, out_ref, *, inv_m):
    out_ref[...] = (logit_ref[...] - lse_ref[...]) * inv_m


def _choose_finalize_tiles(BT, V):
    tile_vf = _pick_tile(V, (4096, 2048, 1024, 512, 256, 128))
    # in + out f32 blocks, double-buffered: keep under ~12 MiB
    max_r = max(8, (12 * 1024 * 1024) // (tile_vf * 16))
    cands = tuple(c for c in (1024, 512, 256, 128, 64, 32, 16, 8) if c <= max_r)
    tile_rf = _pick_tile(BT, cands) if cands else BT
    return tile_rf, tile_vf


def ensemble_finalize(logit_sum, lse_sum, inv_m, tile_r, tile_v):
    BT, V = logit_sum.shape
    return pl.pallas_call(
        functools.partial(_finalize_kernel, inv_m=inv_m),
        out_shape=jax.ShapeDtypeStruct((BT, V), jnp.float32),
        grid_spec=pltpu.PrefetchScalarGridSpec(
            num_scalar_prefetch=0,
            grid=(BT // tile_r, V // tile_v),
            in_specs=[
                pl.BlockSpec((tile_r, tile_v), lambda r, c: (r, c)),
                pl.BlockSpec((tile_r, 1), lambda r, c: (r, 0)),
            ],
            out_specs=pl.BlockSpec((tile_r, tile_v), lambda r, c: (r, c)),
        ),
        input_output_aliases={0: 0},
        compiler_params=_cparams(("parallel", "parallel")),
    )(logit_sum, lse_sum)


# ----------------------------------------------------------------------------
# Decode wrapper (jitted so the finalize alias is an intra-jit donation and the
# small tgt/weight augmentation ops fuse).
# ----------------------------------------------------------------------------
@functools.partial(jax.jit,
                   static_argnames=("tile_bt", "tile_v", "tile_rf", "tile_vf"))
def _decode_impl(ctx, tgt, w_dec_bf16, w_out_bf16, *,
                 tile_bt, tile_v, tile_rf, tile_vf):
    M, B, D = ctx.shape
    T = tgt.shape[1]
    V = w_out_bf16.shape[-1]
    BT = B * T
    # tgt_aug = [tgt | onehot_b], wd_aug = [Wd_m ; ctx_m]  (fuses the ctx add
    # into the hidden matmul while keeping the BT-merged lane-dense layout)
    tgt2 = tgt.reshape(BT, D).astype(jnp.bfloat16)
    onehot = jnp.repeat(jnp.eye(B, dtype=jnp.bfloat16), T, axis=0)        # (BT, B)
    tgt_aug = jnp.concatenate([tgt2, onehot], axis=1)                      # (BT, D+B)
    wd_aug = jnp.concatenate([w_dec_bf16, ctx.astype(jnp.bfloat16)], axis=1)  # (M, D+B, D)

    logit_sum, lse_sum = ensemble_logit_lse(tgt_aug, wd_aug, w_out_bf16,
                                            tile_bt, tile_v)
    out2 = ensemble_finalize(logit_sum, lse_sum, 1.0 / M, tile_rf, tile_vf)
    return out2.reshape(B, T, V)


def ensemble_decode(ctx, tgt, w_dec_bf16, w_out_bf16, *, tile_bt=None, tile_v=None):
    """ctx: (M,B,D) f32, tgt: (B,T,D) f32, w_dec: (M,D,D) bf16, w_out: (M,D,V) bf16
    -> (B,T,V) f32 averaged log-softmax logits."""
    M, B, D = ctx.shape
    T = tgt.shape[1]
    V = w_out_bf16.shape[-1]
    BT = B * T
    auto_bt, auto_v = _choose_decode_tiles(BT, V, D, D + B, M)
    tile_bt = auto_bt if tile_bt is None else int(tile_bt)
    tile_v = auto_v if tile_v is None else int(tile_v)
    tile_rf, tile_vf = _choose_finalize_tiles(BT, V)
    return _decode_impl(ctx, tgt, w_dec_bf16, w_out_bf16,
                        tile_bt=int(tile_bt), tile_v=int(tile_v),
                        tile_rf=int(tile_rf), tile_vf=int(tile_vf))


# ----------------------------------------------------------------------------
# Ensemble wrapper mirroring the PyTorch module's method surface.
# ----------------------------------------------------------------------------
class Ensemble:
    def __init__(self, w_enc, w_dec, w_out, *, tile_bt=None, tile_v=None):
        # w_enc: (M, D_in, D)   w_dec: (M, D, D)   w_out: (M, D, V)
        self.num_models, self.d_in, self.d_model = w_enc.shape
        self.vocab = w_out.shape[-1]
        # bf16 operand copies for the MXU (accumulation stays f32 in-kernel).
        self.w_enc = w_enc.astype(jnp.bfloat16)
        self.w_dec = w_dec.astype(jnp.bfloat16)
        self.w_out = w_out.astype(jnp.bfloat16)
        self.tile_bt = tile_bt
        self.tile_v = tile_v
        self._ctx = None          # (M, B, D) context cache, filled by encode()

    def forward(self, src_seq, src_mask, tgt_seq):
        # PyTorch forward is `pass` -> returns None.
        return None

    def encode(self, src_seq, src_mask):
        # src_seq: (B, S, D_in) float features; src_mask: (B, S) {0,1}
        B, S, _ = src_seq.shape
        M, D = self.num_models, self.d_model
        mask = src_mask.astype(jnp.float32)
        msum = jnp.maximum(jnp.sum(mask, axis=1, keepdims=True), 1.0)        # (B,1)
        pooled = jnp.sum(src_seq * mask[:, :, None], axis=1) / msum          # (B, D_in)
        # Append the pooled-src rows: one lane-dense matmul yields enc AND ctx
        # (exact because the synthetic member encoder is linear).
        x = jnp.concatenate([src_seq.reshape(B * S, -1), pooled], axis=0)
        out = ensemble_encode(x.astype(jnp.bfloat16), self.w_enc)            # (M, B*S+B, D)
        enc = out[:, :B * S, :].reshape(M, B, S, D)                          # member-major
        self._ctx = out[:, B * S:, :]                                        # (M, B, D)
        enc_out = [enc[m] for m in range(M)]
        mask_out = [src_mask for _ in range(M)]
        return enc_out, mask_out, None

    def _get_ctx(self, enc_out, enc_mask):
        if self._ctx is not None:
            return self._ctx                       # precomputed at encode time
        # Fallback: pool the given encoder outputs (small S-tiled kernel).
        enc = jnp.stack(enc_out, axis=0).astype(jnp.float32)     # (M, B, S, D)
        mask = enc_mask[0].astype(jnp.float32)                   # masks identical across members
        return ensemble_ctx_pool(enc, mask)

    def decode(self, enc_out, enc_mask, tgt_seq):
        ctx = self._get_ctx(enc_out, enc_mask)
        dec_out = ensemble_decode(ctx, tgt_seq, self.w_dec, self.w_out,
                                  tile_bt=self.tile_bt, tile_v=self.tile_v)
        return dec_out, None

    def get_logit(self, enc_out, enc_mask, tgt_seq):
        ctx = self._get_ctx(enc_out, enc_mask)
        return ensemble_decode(ctx, tgt_seq, self.w_dec, self.w_out,
                               tile_bt=self.tile_bt, tile_v=self.tile_v)

    def get_attn(self, enc_out, enc_mask, tgt_seq):
        # TODO(synk): synthetic linear member models expose no attention maps.
        return None


# ----------------------------------------------------------------------------
# Pure-JAX f32 reference for verification.
# ----------------------------------------------------------------------------
def _reference(src, mask, tgt, w_enc, w_dec, w_out):
    M = w_enc.shape[0]
    acc = 0.0
    for m in range(M):
        enc = jnp.einsum("bsd,de->bse", src, w_enc[m])
        msum = jnp.sum(mask, axis=1, keepdims=True)
        ctx = jnp.sum(enc * mask[:, :, None], axis=1) / msum
        dec = jnp.einsum("btd,de->bte", tgt, w_dec[m]) + ctx[:, None, :]
        logit = jnp.einsum("btd,dv->btv", dec, w_out[m])
        acc = acc + jax.nn.log_softmax(logit, axis=-1)
    return acc / M


if __name__ == "__main__":
    # M models, batch B, src len S, tgt len T, feature dims, vocab V
    M, B, S, T, D_in, D, V = 3, 2, 8, 16, 16, 32, 256

    key = jax.random.PRNGKey(0)
    k1, k2, k3, k4, k5 = jax.random.split(key, 5)

    src_seq = jax.random.normal(k1, (B, S, D_in), dtype=jnp.float32)
    tgt_seq = jax.random.normal(k2, (B, T, D), dtype=jnp.float32)
    # variable-length source mask (row 0: full, row 1: length 5)
    lengths = jnp.array([S, 5])
    src_mask = (jnp.arange(S)[None, :] < lengths[:, None]).astype(jnp.float32)

    w_enc = 0.1 * jax.random.normal(k3, (M, D_in, D), dtype=jnp.float32)
    w_dec = 0.1 * jax.random.normal(k4, (M, D, D), dtype=jnp.float32)
    w_out = 0.1 * jax.random.normal(k5, (M, D, V), dtype=jnp.float32)

    ref = _reference(src_seq, src_mask, tgt_seq, w_enc, w_dec, w_out)

    # Explicit small tiles: 2 BT tiles x 2 vocab tiles x 3 models exercises the
    # parallel BT axis, the V-tiled online logsumexp, and the model reduction.
    model = Ensemble(w_enc, w_dec, w_out, tile_bt=16, tile_v=128)

    _ = model.forward(src_seq, src_mask, tgt_seq)          # matches PyTorch: None

    enc_out, mask_out, _ = model.encode(src_seq, src_mask)
    dec_out, _ = model.decode(enc_out, mask_out, tgt_seq)
    logits = model.get_logit(enc_out, mask_out, tgt_seq)

    dec_out = jax.block_until_ready(dec_out)
    logits = jax.block_until_ready(logits)

    assert dec_out.shape == (B, T, V)
    # bf16 MXU operands (f32 accumulation) -> loosened tolerance vs f32 reference
    assert jnp.allclose(dec_out, ref, atol=2e-2, rtol=2e-2)
    assert jnp.allclose(logits, ref, atol=2e-2, rtol=2e-2)

    # default (auto) tile selection path
    model_auto = Ensemble(w_enc, w_dec, w_out)
    enc_out2, mask_out2, _ = model_auto.encode(src_seq, src_mask)
    logits_auto = jax.block_until_ready(
        model_auto.get_logit(enc_out2, mask_out2, tgt_seq))
    assert jnp.allclose(logits_auto, ref, atol=2e-2, rtol=2e-2)

    # also exercise the ctx fallback pooling kernel (no encode-time cache)
    model._ctx = None
    dec_fb, _ = model.decode(enc_out, mask_out, tgt_seq)
    dec_fb = jax.block_until_ready(dec_fb)
    assert jnp.allclose(dec_fb, ref, atol=2e-2, rtol=2e-2)

    print("KERNEL_OK")
</pallas_src>

<mosaic_0001>
module attributes {stable_mosaic.version = 11 : i64} {
  func.func @_encode_kernel(%arg0: i32, %arg1: i32, %arg2: i32, %arg3: memref<18x16xbf16, #tpu.memory_space<vmem>>, %arg4: memref<1x16x32xbf16, #tpu.memory_space<vmem>>, %arg5: memref<1x18x32xf32, #tpu.memory_space<vmem>>) attributes {dimension_semantics = [#tpu.dimension_semantics<parallel>, #tpu.dimension_semantics<parallel>, #tpu.dimension_semantics<arbitrary>], iteration_bounds = array<i64: 3, 1, 1>, scalar_prefetch = 0 : i64, scratch_operands = 0 : i64, tpu.core_type = #tpu.core_type<tc>, window_params = [{transform_indices = @transform_0, window_bounds = array<i64: 18, 16>}, {transform_indices = @transform_1, window_bounds = array<i64: 1, 16, 32>}, {transform_indices = @transform_2, window_bounds = array<i64: 1, 18, 32>}]} {
    %c0_i32 = arith.constant 0 : i32
    %0 = arith.cmpi eq, %arg2, %c0_i32 : i32
    %1 = arith.extui %0 : i1 to i32
    %c0_i32_0 = arith.constant 0 : i32
    %2 = arith.cmpi ne, %1, %c0_i32_0 : i32
    scf.if %2 {
      %cst_11 = arith.constant 0.000000e+00 : f32
      %13 = vector.broadcast %cst_11 : f32 to vector<1x18x32xf32>
      %c0_12 = arith.constant 0 : index
      %c0_13 = arith.constant 0 : index
      %c0_14 = arith.constant 0 : index
      %14 = vector.load %arg5[%c0_12, %c0_13, %c0_14] : memref<1x18x32xf32, #tpu.memory_space<vmem>>, vector<1x18x32xf32>
      tpu.vector_store %arg5[%c0_12, %c0_13, %c0_14], %13 {strides = array<i32>} : memref<1x18x32xf32, #tpu.memory_space<vmem>>, vector<1x18x32xf32>,
    } else {
    }
    %c0 = arith.constant 0 : index
    %c0_1 = arith.constant 0 : index
    %c0_2 = arith.constant 0 : index
    %3 = vector.load %arg5[%c0, %c0_1, %c0_2] : memref<1x18x32xf32, #tpu.memory_space<vmem>>, vector<1x18x32xf32>
    %4 = vector.shape_cast %3 : vector<1x18x32xf32> to vector<18x32xf32>
    %c0_3 = arith.constant 0 : index
    %c0_4 = arith.constant 0 : index
    %5 = vector.load %arg3[%c0_3, %c0_4] : memref<18x16xbf16, #tpu.memory_space<vmem>>, vector<18x16xbf16>
    %c0_5 = arith.constant 0 : index
    %c0_6 = arith.constant 0 : index
    %c0_7 = arith.constant 0 : index
    %6 = vector.load %arg4[%c0_5, %c0_6, %c0_7] : memref<1x16x32xbf16, #tpu.memory_space<vmem>>, vector<1x16x32xbf16>
    %7 = vector.shape_cast %6 : vector<1x16x32xbf16> to vector<16x32xbf16>
    %cst = arith.constant dense<0.000000e+00> : vector<18x32xf32>
    %8 = tpu.matmul %5, %7, %cst {dimension_numbers = #tpu.dot_dimension_numbers<[1], [0], [0], [1], [0, 0, 1, 1], [], []>} : vector<18x16xbf16>, vector<16x32xbf16>, vector<18x32xf32> -> vector<18x32xf32>
    %9 = arith.addf %4, %8 : vector<18x32xf32>
    %c0_8 = arith.constant 0 : index
    %c0_9 = arith.constant 0 : index
    %c0_10 = arith.constant 0 : index
    %10 = vector.load %arg5[%c0_8, %c0_9, %c0_10] : memref<1x18x32xf32, #tpu.memory_space<vmem>>, vector<1x18x32xf32>
    %11 = vector.shape_cast %10 : vector<1x18x32xf32> to vector<18x32xf32>
    %12 = vector.shape_cast %9 : vector<18x32xf32> to vector<1x18x32xf32>
    tpu.vector_store %arg5[%c0_8, %c0_9, %c0_10], %12 {strides = array<i32>} : memref<1x18x32xf32, #tpu.memory_space<vmem>>, vector<1x18x32xf32>,
    return
  }
  func.func @transform_0(%arg0: i32, %arg1: i32, %arg2: i32) -> (i32, i32) {
    %c0_i32 = arith.constant 0 : i32
    return %arg1, %arg2 : i32, i32
  }
  func.func @transform_1(%arg0: i32, %arg1: i32, %arg2: i32) -> (i32, i32, i32) {
    %c0_i32 = arith.constant 0 : i32
    %c0_i32_0 = arith.constant 0 : i32
    return %arg0, %arg2, %c0_i32 : i32, i32, i32
  }
  func.func @transform_2(%arg0: i32, %arg1: i32, %arg2: i32) -> (i32, i32, i32) {
    %c0_i32 = arith.constant 0 : i32
    %c0_i32_0 = arith.constant 0 : i32
    return %arg0, %arg1, %c0_i32 : i32, i32, i32
  }
}

</mosaic_0001>

<llo_original>
// kernel: tpu_custom_call.1
$region0: #{tpu_custom_call.1}
  #allocation0 [shape = 'u32[]', space=smem, size = 0x4, offset = 0x4, fixed_abs, tag = 'smem constant byte address 0x4 - core index']
  #allocation1 [shape = 'u32[144,128]{1,0:T(1,128)}', space=vmem, size = 0x12000, scoped, tag = 'internal scratch']
  %s0 = inlined_call_operand.vmem [shape: bf16[18,16], index: 0, kind: input, shape index: {}]
  %s1 = inlined_call_operand.hbm [shape: bf16[3,16,32], index: 1, kind: input, shape index: {}]
  %s2 = inlined_call_operand.hbm [shape: f32[3,18,32], index: 2, kind: output, shape index: {}]
  %s3 = sld [smem:[#allocation0]]
  $region49: #{tpu_custom_call.1} parent=0
    _
  %s5 = ssub.s32 1, %s3
  %s6 = scalar_select 0, %s5, %s3
  $region1: #{tpu_custom_call.1} parent=0
    #allocation2 [shape = 'u8[8192]{0}', space=vmem, size = 0x2000, scoped, tag = 'input window, operand 1']
    #allocation3 [shape = 's32[2]{0}', space=sflag, size = 0x8, scoped, tag = 'scoped memory for tpu_custom_call.1']
    #allocation4 [shape = 's32[2]{0}', space=sflag, size = 0x8, scoped, tag = 'scoped memory for tpu_custom_call.1']
    #allocation5 [shape = 'u8[24576]{0}', space=vmem, size = 0x6000, scoped, tag = 'output window, operand 0']
    %7 = vsyncpa [#allocation3], 0
    %s8 = scalar_lea.sflag [#allocation3], 1
    %9 = vsyncpa %s8, 0
    %10 = vsyncpa [#allocation4], 0
    %s11 = scalar_lea.sflag [#allocation4], 1
    %12 = vsyncpa %s11, 0
    loop: start=0, step=1, limit=5
    $region2: #{tpu_custom_call.1} parent=1 // loop_pre_header
      _
    $region3: #{tpu_custom_call.1} parent=1 // loop_header
      %s14 = sphi 0, %s18
      %p15 = scmp.ge.s32.totalorder %s14, 5
      %s21 = sphi 0, %s40
      %s22 = sphi 0, %s36
      %s23 = sphi 0, %s32
      %s24 = sphi 0, %s21
      %s25 = sphi 0, %s22
      %s26 = sphi 0, %s23
      %s27 = sphi 0, %s24
      %s28 = sphi 0, %s25
      %s29 = sphi 0, %s26
      %s45 = sphi 0, %s47
      %s48 = sphi 0, %s45
      %s49 = sphi 0, %s48
      %s65 = sphi 0, %s49
      %s73 = sphi 0, %s75
      %s76 = sphi 0, %s73
      %s77 = sphi 0, %s76
      %s93 = sphi 0, %s77
      %s101 = sphi 0, %s103
      %s104 = sphi 0, %s101
      %s105 = sphi 0, %s104
      %s121 = sphi 0, %s105
    $region4: #{tpu_custom_call.1} parent=1 // loop_header_branch
      %17 = sbr.rel (%p15) target = $region8
    $region5: #{tpu_custom_call.1} parent=1 // loop_body
      %s19 = ssub.s32 %s14, 1
      %s20 = ssub.s32 %s14, 2
      %s30 = sadd.s32 1, %s23
      %p31 = scmp.ge.s32.totalorder %s30, 1
      %s32 = scalar_select %p31, 0, %s30
      %s33 = sadd.s32 1, %s22
      %s34 = scalar_select %p31, %s33, %s22
      %p35 = scmp.ge.s32.totalorder %s34, 1
      %s36 = scalar_select %p35, 0, %s34
      %s37 = sadd.s32 1, %s21
      %s38 = scalar_select %p35, %s37, %s21
      %p39 = scmp.ge.s32.totalorder %s38, 3
      %s40 = scalar_select %p39, 0, %s38
      %s41 = ssub.s32 %s22, %s36
      %s42 = ssub.s32 %s23, %s32
      %s43 = sor.u32 %s41, %s42
      %p44 = scmp.eq.s32.totalorder %s43, 0
      %s46 = sadd.s32 %s45, 1
      %s47 = scalar_select %p44, %s45, %s46
      %p50 = pneg %p44
      %p51 = scmp.eq.s32.totalorder %s14, 2
      %p52 = por %p50, %p51
      %p53 = scmp.ne.s32.totalorder %s45, %s48
      %p54 = scmp.eq.s32.totalorder %s14, 0
      %p55 = por %p53, %p54
      %p56 = scmp.ne.s32.totalorder %s45, %s48
      %p57 = scmp.eq.s32.totalorder %s19, 2
      %p58 = por %p56, %p57
      %p59 = scmp.ne.s32.totalorder %s48, %s49
      %p60 = scmp.eq.s32.totalorder %s19, 0
      %p61 = por %p59, %p60
      %p62 = scmp.ne.s32.totalorder %s48, %s49
      %p63 = scmp.eq.s32.totalorder %s20, 2
      %p64 = por %p62, %p63
      %p66 = scmp.ne.s32.totalorder %s49, %s65
      %p67 = scmp.eq.s32.totalorder %s20, 0
      %p68 = por %p66, %p67
      %s69 = ssub.s32 %s21, %s40
      %s70 = ssub.s32 %s23, %s32
      %s71 = sor.u32 %s69, %s70
      %p72 = scmp.eq.s32.totalorder %s71, 0
      %s74 = sadd.s32 %s73, 1
      %s75 = scalar_select %p72, %s73, %s74
      %p78 = pneg %p72
      %p79 = scmp.eq.s32.totalorder %s14, 2
      %p80 = por %p78, %p79
      %p81 = scmp.ne.s32.totalorder %s73, %s76
      %p82 = scmp.eq.s32.totalorder %s14, 0
      %p83 = por %p81, %p82
      %p84 = scmp.ne.s32.totalorder %s73, %s76
      %p85 = scmp.eq.s32.totalorder %s19, 2
      %p86 = por %p84, %p85
      %p87 = scmp.ne.s32.totalorder %s76, %s77
      %p88 = scmp.eq.s32.totalorder %s19, 0
      %p89 = por %p87, %p88
      %p90 = scmp.ne.s32.totalorder %s76, %s77
      %p91 = scmp.eq.s32.totalorder %s20, 2
      %p92 = por %p90, %p91
      %p94 = scmp.ne.s32.totalorder %s77, %s93
      %p95 = scmp.eq.s32.totalorder %s20, 0
      %p96 = por %p94, %p95
      %s97 = ssub.s32 %s21, %s40
      %s98 = ssub.s32 %s22, %s36
      %s99 = sor.u32 %s97, %s98
      %p100 = scmp.eq.s32.totalorder %s99, 0
      %s102 = sadd.s32 %s101, 1
      %s103 = scalar_select %p100, %s101, %s102
      %p106 = pneg %p100
      %p107 = scmp.eq.s32.totalorder %s14, 2
      %p108 = por %p106, %p107
      %p109 = scmp.ne.s32.totalorder %s101, %s104
      %p110 = scmp.eq.s32.totalorder %s14, 0
      %p111 = por %p109, %p110
      %p112 = scmp.ne.s32.totalorder %s101, %s104
      %p113 = scmp.eq.s32.totalorder %s19, 2
      %p114 = por %p112, %p113
      %p115 = scmp.ne.s32.totalorder %s104, %s105
      %p116 = scmp.eq.s32.totalorder %s19, 0
      %p117 = por %p115, %p116
      %p118 = scmp.ne.s32.totalorder %s104, %s105
      %p119 = scmp.eq.s32.totalorder %s20, 2
      %p120 = por %p118, %p119
      %p122 = scmp.ne.s32.totalorder %s105, %s121
      %p123 = scmp.eq.s32.totalorder %s20, 0
      %p124 = por %p122, %p123
      %p125 = scmp.le.s32.totalorder 1, %s14
      %p126 = scmp.lt.s32.totalorder %s14, 4
      %p127 = pnand %p125, %p126
      %p128 = pneg %p127
      // Predicated region
      $region9: #{tpu_custom_call.1} parent=5 // pred_check
        _
      $region10: #{tpu_custom_call.1} parent=5 // pred_check_branch
        %130 = sbr.rel (%p127) target = $region12
      $region11: #{tpu_custom_call.1} parent=5 // pred_region
        %s131 = ssub.s32 %s14, 1
        // Predicated region
        $region13: #{tpu_custom_call.1} parent=11 // pred_check
          %p132 = pneg %p61
        $region14: #{tpu_custom_call.1} parent=11 // pred_check_branch
          %134 = sbr.rel (%p132) target = $region16
        $region15: #{tpu_custom_call.1} parent=11 // pred_region
          %s135 = smul.u32 3, %s25
          %p136 = scmp.lt.s32.totalorder %s135, 2
          %s137 = scalar_select %p136, %s135, 2
          %p138 = scmp.lt.s32.totalorder %s26, 0
          %s139 = scalar_select %p138, %s26, 0
          %s140 = sadd.s32 %s139, %s137
          %s141 = smul.addr %s140, 4
          %s142 = scalar_lea.vmem %s0, %s141
          %s143 = smul.u32 3, %s25
        $region16: #{tpu_custom_call.1} parent=11 // pred_fallthru
          _
      $region12: #{tpu_custom_call.1} parent=5 // pred_fallthru
        _
      %p144 = scmp.lt.s32.totalorder %s14, 3
      // Predicated region
      $region17: #{tpu_custom_call.1} parent=5 // pred_check
        %p145 = pneg %p144
      $region18: #{tpu_custom_call.1} parent=5 // pred_check_branch
        %147 = sbr.rel (%p145) target = $region20
      $region19: #{tpu_custom_call.1} parent=5 // pred_region
        // Predicated region
        $region21: #{tpu_custom_call.1} parent=19 // pred_check
          %p148 = pneg %p83
        $region22: #{tpu_custom_call.1} parent=19 // pred_check_branch
          %150 = sbr.rel (%p148) target = $region24
        $region23: #{tpu_custom_call.1} parent=19 // pred_region
          %s151 = sand.u32 %s73, 1
          %s152 = scalar_lea.sflag [#allocation3], %s151
          %s153 = sand.u32 %s73, 1
          %s154 = smul.addr %s153, 8
          %s155 = scalar_lea.vmem [#allocation2], %s154
          %s156 = smul.u32 2, %s23
          %s158 = ssub.s32 128, 128
          %159 = vsyncadd %s152, %s158
          %s160 = smul.addr %s21, 2
          %s161 = sadd.s32 %s156, %s160
          %s162 = smul.addr %s161, 64
          %s163 = scalar_lea.hbm %s1, %s162
          %s164 = sshll.u32 %s155, 4
          %s165 = int_to_ptr.vmem [resolvable:$true] %s164
          %170 = dma.hbm_to_vmem [thread:$0]  %s163, 128, %s165, %s152, 64, 64, 4
        $region24: #{tpu_custom_call.1} parent=19 // pred_fallthru
          _
      $region20: #{tpu_custom_call.1} parent=5 // pred_fallthru
        _
      %p171 = scmp.le.s32.totalorder 1, %s14
      %p172 = scmp.lt.s32.totalorder %s14, 4
      %p173 = pnand %p171, %p172
      %p174 = pneg %p173
      // Predicated region
      $region25: #{tpu_custom_call.1} parent=5 // pred_check
        _
      $region26: #{tpu_custom_call.1} parent=5 // pred_check_branch
        %176 = sbr.rel (%p173) target = $region28
      $region27: #{tpu_custom_call.1} parent=5 // pred_region
        %s177 = ssub.s32 %s14, 1
        %s178 = sand.u32 %s76, 1
        %s179 = scalar_lea.sflag [#allocation3], %s178
        %s180 = sand.u32 %s76, 1
        %s181 = smul.addr %s180, 8
        %s182 = scalar_lea.vmem [#allocation2], %s181
        // Predicated region
        $region29: #{tpu_custom_call.1} parent=27 // pred_check
          %p183 = pneg %p89
        $region30: #{tpu_custom_call.1} parent=27 // pred_check_branch
          %185 = sbr.rel (%p183) target = $region32
        $region31: #{tpu_custom_call.1} parent=27 // pred_region
          %186 = dma.done %s179, 128
        $region32: #{tpu_custom_call.1} parent=27 // pred_fallthru
          _
        %s187 = smul.u32 3, %s25
        %p188 = scmp.lt.s32.totalorder %s187, 2
        %s189 = scalar_select %p188, %s187, 2
        %p190 = scmp.lt.s32.totalorder %s26, 0
        %s191 = scalar_select %p190, %s26, 0
        %s192 = sadd.s32 %s191, %s189
        %s193 = smul.addr %s192, 4
        %s194 = scalar_lea.vmem %s0, %s193
        %p195 = pneg %p61
        %p196 = pneg %p58
        %s197 = sand.u32 %s76, 1
        %s198 = scalar_lea.sflag [#allocation3], %s197
        %s199 = sand.u32 %s76, 1
        %s200 = smul.addr %s199, 8
        %s201 = scalar_lea.vmem [#allocation2], %s200
        %p202 = pneg %p89
        %p203 = pneg %p86
        %p204 = pneg %p117
        %p205 = pneg %p114
        %s206 = sand.u32 %s104, 1
        %s207 = scalar_lea.sflag [#allocation4], %s206
        %s208 = sand.u32 %s104, 1
        %s209 = smul.addr %s208, 24
        %s210 = scalar_lea.vmem [#allocation5], %s209
        %s211 = smul.u32 3, %s25
        %p212 = scmp.lt.s32.totalorder %s211, 2
        %s213 = scalar_select %p212, %s211, 2
        %p214 = scmp.lt.s32.totalorder %s26, 0
        %s215 = scalar_select %p214, %s26, 0
        %s216 = sadd.s32 %s215, %s213
        %s217 = smul.addr %s216, 4
        %s218 = scalar_lea.vmem %s0, %s217
        %s219 = smul.u32 3, %s25
        %s220 = smul.u32 2, %s26
        %s221 = smul.u32 3, %s25
        %p223 = scmp.eq.s32.totalorder %s26, 0
        // Predicated region
        $region33: #{tpu_custom_call.1} parent=27 // pred_check
          %p224 = pneg %p223
        $region34: #{tpu_custom_call.1} parent=27 // pred_check_branch
          %226 = sbr.rel (%p224) target = $region36
        $region35: #{tpu_custom_call.1} parent=27 // pred_region
          %vm227 = vcmask 261120
          %228 = vst.msk [vmem:[%s210] sm:$0xff] %vm227, 0.0
          %229 = vst.msk [vmem:[%s210 + $0x8] sm:$0xff] %vm227, 0.0
          %vm230 = vcmask 254976
          %231 = vst.msk [vmem:[%s210 + $0x10] sm:$0x3] %vm230, 0.0
        $region36: #{tpu_custom_call.1} parent=27 // pred_fallthru
          _
        %v232 = vld [vmem:[%s210] sm:$0xff]
        %v233 = vld [vmem:[%s210 + $0x8] sm:$0xff]
        %v234 = vld [vmem:[%s210 + $0x10] sm:$0x3]
        %v235 = vld [vmem:[%s218] sm:$0xf]
        %v236 = vld [vmem:[%s218 + $0x4] sm:$0xf]
        %v237 = vld [vmem:[%s218 + $0x8] sm:$0x1]
        %v238 = vld [vmem:[%s182] sm:$0xf]
        %v239 = vld [vmem:[%s182 + $0x4] sm:$0xf]
        %v243 = vunpack.c.l.b16 %v235
        %v244 = vunpack.c.l.b16 %v236
        %v245 = vunpack.c.l.b16 %v237
        %v246 = vpack.c.b16 %v244, %v243
        %v247 = vpack.c.b16 %v245, %v245
        %v250 = vunpack.c.l.b16 %v238
        %v251 = vunpack.c.l.b16 %v239
        %v252 = vpack.c.b16 %v251, %v250
        %vm254 = vcmask 130048
        %v256 = vsel %vm254, %v246, 0
        %v259 = vsel %vm254, %v247, 0
        %261 = vmatprep.subr.bf16.mxu0 0
        %262 = vmatpush1.bf16.msra.mxu0 %v252
        %263 = vmatprep.subr.bf16.mxu0 0
        %264 = vmatpush1.bf16.msra.mxu0 0
        %265 = vmatprep.subr.bf16.mxu0 0
        %266 = vmatpush1.bf16.msra.mxu0 0
        %267 = vmatprep.subr.bf16.mxu0 0
        %268 = vmatpush1.bf16.msra.mxu0 0
        %269 = vmatprep.subr.bf16.mxu0 0
        %270 = vmatpush1.bf16.msra.mxu0 0
        %271 = vmatprep.subr.bf16.mxu0 0
        %272 = vmatpush1.bf16.msra.mxu0 0
        %273 = vmatprep.subr.bf16.mxu0 0
        %274 = vmatpush1.bf16.msra.mxu0 0
        %275 = vmatprep.subr.bf16.mxu0 0
        %276 = vmatpush1.bf16.msra.mxu0 0
        %277 = vmatprep.subr.bf16.mxu0 0
        %278 = vmatpush1.bf16.msra.mxu0 0
        %279 = vmatprep.subr.bf16.mxu0 0
        %280 = vmatpush1.bf16.msra.mxu0 0
        %281 = vmatprep.subr.bf16.mxu0 0
        %282 = vmatpush1.bf16.msra.mxu0 0
        %283 = vmatprep.subr.bf16.mxu0 0
        %284 = vmatpush1.bf16.msra.mxu0 0
        %285 = vmatprep.subr.bf16.mxu0 0
        %286 = vmatpush1.bf16.msra.mxu0 0
        %287 = vmatprep.subr.bf16.mxu0 0
        %288 = vmatpush1.bf16.msra.mxu0 0
        %289 = vmatprep.subr.bf16.mxu0 0
        %290 = vmatpush1.bf16.msra.mxu0 0
        %291 = vmatprep.subr.bf16.mxu0 0
        %292 = vmatpush1.bf16.msra.mxu0 0
        %293 = vmatprep.mubr.bf16.mxu0 0
        %294 = vmatmul.mubr.bf16.gmra.mrb[0].mxu0 %v256
        %v295 = vpop.f32.mrb[0].mxu0
        %v296 = vadd.f32 0.0, %v295
        %v297 = vpop.f32.mrb[0].mxu0
        %v298 = vpop.f32.mrb[0].mxu0
        %v299 = vadd.f32 0.0, %v298
        %v300 = vpop.f32.mrb[0].mxu0
        %301 = vmatprep.mubr.bf16.mxu0 0
        %302 = vmatmul.mubr.bf16.gmra.mrb[0].mxu0 %v259
        %v303 = vpop.f32.mrb[0].mxu0
        %v304 = vadd.f32 0.0, %v303
        %v305 = vpop.f32.mrb[0].mxu0
        %v306 = vpop.f32.mrb[0].mxu0
        %v307 = vpop.f32.mrb[0].mxu0
        %308 = vdwg.mxu0
        %v309 = vadd.f32 %v232, %v296
        %v310 = vadd.f32 %v233, %v299
        %v311 = vadd.f32 %v234, %v304
        %vm312 = vcmask 261120
        %313 = vst.msk [vmem:[%s210] sm:$0xff] %vm312, %v309
        %314 = vst.msk [vmem:[%s210 + $0x8] sm:$0xff] %vm312, %v310
        %vm315 = vcmask 254976
        %316 = vst.msk [vmem:[%s210 + $0x10] sm:$0x3] %vm315, %v311
        %s317 = sand.u32 %s104, 1
        %s318 = scalar_lea.sflag [#allocation4], %s317
        %s319 = sand.u32 %s104, 1
        %s320 = smul.addr %s319, 24
        %s321 = scalar_lea.vmem [#allocation5], %s320
        // Predicated region
        $region37: #{tpu_custom_call.1} parent=27 // pred_check
          %p322 = pneg %p114
        $region38: #{tpu_custom_call.1} parent=27 // pred_check_branch
          %324 = sbr.rel (%p322) target = $region40
        $region39: #{tpu_custom_call.1} parent=27 // pred_region
          %s325 = smul.u32 3, %s25
          %s327 = ssub.s32 384, 384
          %328 = vsyncadd %s318, %s327
          %s329 = smul.addr %s24, 3
          %s330 = sadd.s32 %s325, %s329
          %s331 = smul.addr %s330, 128
          %s332 = scalar_lea.hbm %s2, %s331
          %s333 = sshll.u32 %s321, 4
          %s334 = int_to_ptr.vmem [resolvable:$true] %s333
          %339 = dma.vmem_to_hbm [thread:$0]  %s334, 384, %s332, %s318, 128, 128, 8
        $region40: #{tpu_custom_call.1} parent=27 // pred_fallthru
          _
      $region28: #{tpu_custom_call.1} parent=5 // pred_fallthru
        _
      %p340 = scmp.le.s32.totalorder 2, %s14
      // Predicated region
      $region41: #{tpu_custom_call.1} parent=5 // pred_check
        %p341 = pneg %p340
      $region42: #{tpu_custom_call.1} parent=5 // pred_check_branch
        %343 = sbr.rel (%p341) target = $region44
      $region43: #{tpu_custom_call.1} parent=5 // pred_region
        %s344 = ssub.s32 %s14, 2
        // Predicated region
        $region45: #{tpu_custom_call.1} parent=43 // pred_check
          %p345 = pneg %p120
        $region46: #{tpu_custom_call.1} parent=43 // pred_check_branch
          %347 = sbr.rel (%p345) target = $region48
        $region47: #{tpu_custom_call.1} parent=43 // pred_region
          %s348 = sand.u32 %s105, 1
          %s349 = scalar_lea.sflag [#allocation4], %s348
          %s350 = sand.u32 %s105, 1
          %s351 = smul.addr %s350, 24
          %s352 = scalar_lea.vmem [#allocation5], %s351
          %353 = dma.done %s349, 384
        $region48: #{tpu_custom_call.1} parent=43 // pred_fallthru
          _
      $region44: #{tpu_custom_call.1} parent=5 // pred_fallthru
        _
    $region6: #{tpu_custom_call.1} parent=1 // loop_footer
      %s18 = sadd.s32 1, %s14
    $region7: #{tpu_custom_call.1} parent=1 // loop_footer_branch
      %13 = sbr.rel target = $region3
    $region8: #{tpu_custom_call.1} parent=1 // loop_exit
      _
    %354 = vsyncpa [#allocation3], 1
    %s355 = scalar_lea.sflag [#allocation3], 1
    %356 = vsyncpa %s355, 1
    %357 = vsyncpa [#allocation4], 1
    %s358 = scalar_lea.sflag [#allocation4], 1
    %359 = vsyncpa %s358, 1

</llo_original>
